<compile_context>
chip_gen: v5e
topology: v5e:2x2
jax: 0.10.0
libtpu: 0.0.40
codegen_flags: <defaults>
</compile_context>

<pallas_src>
import functools
import math

import jax
import jax.numpy as jnp
from jax import lax
from jax.experimental import pallas as pl
from jax.experimental.pallas import tpu as pltpu


# ---------------------------------------------------------------------------
# Kernels
# ---------------------------------------------------------------------------

def _proj_kernel(p_ref, w_ref, b_ref, o_ref):
    """Full-K projection: o = p @ w + b, f32 accumulation on the MXU."""
    acc = jnp.dot(p_ref[...], w_ref[...], preferred_element_type=jnp.float32)
    o_ref[...] = (acc + b_ref[...]).astype(o_ref.dtype)


def _proj_kernel_splitk(p_ref, w_ref, b_ref, o_ref, acc_ref):
    """Split-K projection with an f32 VMEM accumulator (large-K fallback)."""
    k = pl.program_id(2)

    @pl.when(k == 0)
    def _init():
        acc_ref[...] = jnp.zeros_like(acc_ref)

    acc_ref[...] += jnp.dot(p_ref[...], w_ref[...],
                            preferred_element_type=jnp.float32)

    @pl.when(k == pl.num_programs(2) - 1)
    def _finalize():
        o_ref[...] = (acc_ref[...] + b_ref[...]).astype(o_ref.dtype)


# ---------------------------------------------------------------------------
# Helpers
# ---------------------------------------------------------------------------

def _round_up(x, m):
    return ((x + m - 1) // m) * m


def _cdiv(a, b):
    return (a + b - 1) // b


def _vmem_limit_bytes():
    """Half of the chip's physical VMEM (64 MiB on v5e/v6e, 32 MiB on v7x)."""
    try:
        cap = int(pltpu.get_tpu_info().vmem_capacity_bytes)
    except Exception:
        cap = 64 * 1024 * 1024
    return max(32 * 1024 * 1024, min(cap // 2, 96 * 1024 * 1024))


def _extract_patches(x, patch_size, stride):
    """im2col: (B, C, H, W) -> (B, N, C*ph*pw), feature order (C, ph, pw)."""
    B, C, H, W = x.shape
    ph, pw = patch_size
    sh, sw = stride
    oh = (H - ph) // sh + 1
    ow = (W - pw) // sw + 1
    if (sh, sw) == (ph, pw) and H == oh * ph and W == ow * pw:
        # Non-overlapping patches: pure reshape + transpose (no gather).
        p = x.reshape(B, C, oh, ph, ow, pw)
        p = p.transpose(0, 2, 4, 1, 3, 5).reshape(B, oh * ow, C * ph * pw)
        return p, oh, ow
    # Overlapping / non-tiling strides: strided slices (no XLA gather).
    cols = []
    for di in range(ph):
        for dj in range(pw):
            sl = lax.slice(
                x, (0, 0, di, dj),
                (B, C, di + (oh - 1) * sh + 1, dj + (ow - 1) * sw + 1),
                (1, 1, sh, sw))                              # (B, C, oh, ow)
            cols.append(sl)
    p = jnp.stack(cols, axis=2).reshape(B, C, ph, pw, oh, ow)
    p = p.transpose(0, 4, 5, 1, 2, 3).reshape(B, oh * ow, C * ph * pw)
    return p, oh, ow


def _select_tiles(M, K_pad, E_pad, in_bytes, out_bytes, budget, min_tm):
    """Pick (tm, tn, tk, split_k) under a VMEM working-set budget."""
    # Keep the whole embed dim (and the whole weight) resident when reasonable.
    if E_pad <= 2048:
        tn = E_pad
    else:
        tn = max(t for t in (1024, 512, 256, 128) if E_pad % t == 0)

    def working_set(tm, tk, split_k):
        return (2 * tm * tk * in_bytes          # double-buffered patch tiles
                + 2 * tk * tn * in_bytes        # double-buffered weight tiles
                + 2 * tn * 4                    # bias
                + 2 * tm * tn * out_bytes       # double-buffered output tiles
                + (tm * tn * 4 if split_k else 0))  # f32 accumulator scratch

    tm_cands = [t for t in (1024, 512, 256, 128, 64, 32, 16, 8) if t >= min_tm]
    if not tm_cands:
        tm_cands = [min_tm]

    tk = K_pad
    while True:
        split_k = tk < K_pad
        fitting = [t for t in tm_cands if working_set(t, tk, split_k) <= budget]
        if fitting:
            break
        new_tk = max(128, _round_up(tk // 2, 128))
        if new_tk == tk:                        # cannot shrink further
            fitting = [tm_cands[-1]]
            break
        tk = new_tk
    split_k = tk < K_pad

    # Largest row tile that does not grossly over-pad M.
    le_m = [t for t in fitting if t <= M]
    tm = le_m[0] if le_m else fitting[-1]
    # Feed both v7x TensorCores: make sure some parallel axis has >= 2 steps.
    if E_pad // tn < 2 and _cdiv(M, tm) < 2:
        for t in fitting:
            if t < tm and _cdiv(M, t) >= 2:
                tm = t
                break
    return tm, tn, tk, split_k


# ---------------------------------------------------------------------------
# Forward
# ---------------------------------------------------------------------------

@functools.partial(jax.jit,
                   static_argnames=("patch_size", "stride", "use_bf16_matmul"))
def patch_embed_forward(x, weight, bias, *, patch_size, stride,
                        use_bf16_matmul=False):
    """
    x:      (B, C, H, W)   NCHW
    weight: (E, C, ph, pw) PyTorch Conv2d weight layout
    bias:   (E,)
    returns (B, N, E)  ==  proj(x).flatten(2).transpose(1, 2)
    """
    B, C, H, W = x.shape
    E = weight.shape[0]
    ph, pw = patch_size

    patches, oh, ow = _extract_patches(x, patch_size, stride)     # (B, N, K)
    N = oh * ow
    K = C * ph * pw
    M = B * N

    in_dtype = jnp.bfloat16 if use_bf16_matmul else x.dtype
    out_dtype = x.dtype
    in_bytes = jnp.dtype(in_dtype).itemsize
    out_bytes = jnp.dtype(out_dtype).itemsize

    K_pad = _round_up(K, 128)                  # lane-dense contraction dim
    E_pad = _round_up(E, 128)                  # lane-dense output dim

    vmem_limit = _vmem_limit_bytes()
    budget = (vmem_limit * 3) // 4             # leave pipelining headroom
    min_tm = 16 if in_bytes < 4 else 8
    tm, tn, tk, split_k = _select_tiles(M, K_pad, E_pad, in_bytes, out_bytes,
                                        budget, min_tm)
    M_pad = _round_up(M, tm)
    K_gp = _round_up(K_pad, tk)                # K grid divides evenly

    # ---- fused producers: im2col view + cast + (optional) pad --------------
    p2d = patches.reshape(M, K)
    if p2d.dtype != in_dtype:
        p2d = p2d.astype(in_dtype)
    if M_pad != M or K_gp != K:
        p2d = jnp.pad(p2d, ((0, M_pad - M), (0, K_gp - K)))

    w2d = weight.reshape(E, K).T               # (K, E), feature order (C,ph,pw)
    if w2d.dtype != in_dtype:
        w2d = w2d.astype(in_dtype)
    if K_gp != K or E_pad != E:
        w2d = jnp.pad(w2d, ((0, K_gp - K), (0, E_pad - E)))

    b2d = bias.astype(jnp.float32).reshape(1, E)
    if E_pad != E:
        b2d = jnp.pad(b2d, ((0, 0), (0, E_pad - E)))

    grid = (M_pad // tm, E_pad // tn, K_gp // tk)

    cost = pl.CostEstimate(
        flops=2 * M_pad * K_gp * E_pad,
        transcendentals=0,
        bytes_accessed=((M_pad * K_gp + K_gp * E_pad) * in_bytes
                        + E_pad * 4 + M_pad * E_pad * out_bytes),
    )

    kernel = _proj_kernel_splitk if split_k else _proj_kernel
    scratch = [pltpu.VMEM((tm, tn), jnp.float32)] if split_k else []

    out = pl.pallas_call(
        kernel,
        out_shape=jax.ShapeDtypeStruct((M_pad, E_pad), out_dtype),
        grid_spec=pltpu.PrefetchScalarGridSpec(
            num_scalar_prefetch=0,
            grid=grid,
            in_specs=[
                # Patch rows: change with (i, k) only.
                pl.BlockSpec((tm, tk), lambda i, j, k: (i, k)),
                # Weight: constant block index in the common case
                # (single E tile, single K tile) -> DMA'd once, stays in VMEM.
                pl.BlockSpec((tk, tn), lambda i, j, k: (k, j)),
                pl.BlockSpec((1, tn), lambda i, j, k: (0, j)),
            ],
            out_specs=pl.BlockSpec((tm, tn), lambda i, j, k: (i, j)),
            scratch_shapes=scratch,
        ),
        compiler_params=pltpu.CompilerParams(
            dimension_semantics=("parallel", "parallel", "arbitrary"),
            vmem_limit_bytes=vmem_limit,
        ),
        cost_estimate=cost,
    )(p2d, w2d, b2d)

    if M_pad != M or E_pad != E:               # skip entirely when aligned
        out = out[:M, :E]
    return out.reshape(B, N, E)


# ---------------------------------------------------------------------------
# Self-test
# ---------------------------------------------------------------------------

if __name__ == "__main__":
    # Module config: img_size=16, patch_size=8, in_chans=4, embed_dim=32, stride=8
    B, C, H, W = 2, 4, 16, 16
    patch_size = (8, 8)
    stride = (8, 8)
    embed_dim = 32

    key = jax.random.PRNGKey(0)
    kx, kw, kb = jax.random.split(key, 3)
    x = jax.random.normal(kx, (B, C, H, W), jnp.float32)
    fan_in = C * patch_size[0] * patch_size[1]
    bound = 1.0 / math.sqrt(fan_in)
    weight = jax.random.uniform(kw, (embed_dim, C) + patch_size, jnp.float32,
                                -bound, bound)
    bias = jax.random.uniform(kb, (embed_dim,), jnp.float32, -bound, bound)

    # Default path: f32 MXU operands (drop-in parity with the PyTorch module).
    out = patch_embed_forward(x, weight, bias,
                              patch_size=patch_size, stride=stride)
    out = jax.block_until_ready(out)

    # Reference: Conv2d + flatten(2).transpose(1, 2), full f32.
    conv = lax.conv_general_dilated(
        x, weight, window_strides=stride, padding="VALID",
        dimension_numbers=("NCHW", "OIHW", "NCHW"),
        precision=lax.Precision.HIGHEST)
    conv = conv + bias[None, :, None, None]
    ref = conv.reshape(B, embed_dim, -1).transpose(0, 2, 1)

    assert out.shape == ref.shape == (B, 4, embed_dim), (out.shape, ref.shape)
    assert jnp.allclose(out, ref, atol=2e-2, rtol=2e-2), \
        float(jnp.max(jnp.abs(out - ref)))

    # Opt-in bf16 MXU path vs. a bf16-quantized high-precision reference.
    out_bf16 = patch_embed_forward(x, weight, bias, patch_size=patch_size,
                                   stride=stride, use_bf16_matmul=True)
    out_bf16 = jax.block_until_ready(out_bf16)
    xq = x.astype(jnp.bfloat16).astype(jnp.float32)
    wq = weight.astype(jnp.bfloat16).astype(jnp.float32)
    convq = lax.conv_general_dilated(
        xq, wq, window_strides=stride, padding="VALID",
        dimension_numbers=("NCHW", "OIHW", "NCHW"),
        precision=lax.Precision.HIGHEST)
    refq = (convq + bias[None, :, None, None]).reshape(
        B, embed_dim, -1).transpose(0, 2, 1)
    assert jnp.allclose(out_bf16, refq, atol=1e-2, rtol=1e-2)

    print("KERNEL_OK")
</pallas_src>

<mosaic_0001>
module attributes {stable_mosaic.version = 11 : i64} {
  func.func @_proj_kernel(%arg0: i32, %arg1: i32, %arg2: i32, %arg3: memref<8x256xf32, #tpu.memory_space<vmem>>, %arg4: memref<256x128xf32, #tpu.memory_space<vmem>>, %arg5: memref<1x128xf32, #tpu.memory_space<vmem>>, %arg6: memref<8x128xf32, #tpu.memory_space<vmem>>) attributes {dimension_semantics = [#tpu.dimension_semantics<parallel>, #tpu.dimension_semantics<parallel>, #tpu.dimension_semantics<arbitrary>], iteration_bounds = array<i64: 1, 1, 1>, scalar_prefetch = 0 : i64, scratch_operands = 0 : i64, tpu.core_type = #tpu.core_type<tc>, window_params = [{transform_indices = @transform_0, window_bounds = array<i64: 8, 256>}, {transform_indices = @transform_1, window_bounds = array<i64: 256, 128>}, {transform_indices = @transform_2, window_bounds = array<i64: 1, 128>}, {transform_indices = @transform_3, window_bounds = array<i64: 8, 128>}]} {
    %c0 = arith.constant 0 : index
    %c0_0 = arith.constant 0 : index
    %0 = vector.load %arg3[%c0, %c0_0] : memref<8x256xf32, #tpu.memory_space<vmem>>, vector<8x256xf32>
    %c0_1 = arith.constant 0 : index
    %c0_2 = arith.constant 0 : index
    %1 = vector.load %arg4[%c0_1, %c0_2] : memref<256x128xf32, #tpu.memory_space<vmem>>, vector<256x128xf32>
    %cst = arith.constant dense<0.000000e+00> : vector<8x128xf32>
    %2 = tpu.matmul %0, %1, %cst {dimension_numbers = #tpu.dot_dimension_numbers<[1], [0], [0], [1], [0, 0, 1, 1], [], []>} : vector<8x256xf32>, vector<256x128xf32>, vector<8x128xf32> -> vector<8x128xf32>
    %c0_3 = arith.constant 0 : index
    %c0_4 = arith.constant 0 : index
    %3 = vector.load %arg5[%c0_3, %c0_4] : memref<1x128xf32, #tpu.memory_space<vmem>>, vector<1x128xf32>
    %4 = vector.broadcast %3 : vector<1x128xf32> to vector<8x128xf32>
    %5 = arith.addf %2, %4 : vector<8x128xf32>
    %c0_5 = arith.constant 0 : index
    %c0_6 = arith.constant 0 : index
    %6 = vector.load %arg6[%c0_5, %c0_6] : memref<8x128xf32, #tpu.memory_space<vmem>>, vector<8x128xf32>
    tpu.vector_store %arg6[%c0_5, %c0_6], %5 {strides = array<i32>} : memref<8x128xf32, #tpu.memory_space<vmem>>, vector<8x128xf32>,
    return
  }
  func.func @transform_0(%arg0: i32, %arg1: i32, %arg2: i32) -> (i32, i32) {
    %c0_i32 = arith.constant 0 : i32
    return %arg0, %arg2 : i32, i32
  }
  func.func @transform_1(%arg0: i32, %arg1: i32, %arg2: i32) -> (i32, i32) {
    %c0_i32 = arith.constant 0 : i32
    return %arg2, %arg1 : i32, i32
  }
  func.func @transform_2(%arg0: i32, %arg1: i32, %arg2: i32) -> (i32, i32) {
    %c0_i32 = arith.constant 0 : i32
    %c0_i32_0 = arith.constant 0 : i32
    return %c0_i32, %arg1 : i32, i32
  }
  func.func @transform_3(%arg0: i32, %arg1: i32, %arg2: i32) -> (i32, i32) {
    %c0_i32 = arith.constant 0 : i32
    return %arg0, %arg1 : i32, i32
  }
}

</mosaic_0001>

<llo_original>
// kernel: patch_embed_forward.1
$region0: #{patch_embed_forward.1}
  #allocation0 [shape = 'u32[]', space=smem, size = 0x4, offset = 0x4, fixed_abs, tag = 'smem constant byte address 0x4 - core index']
  #allocation1 [shape = 'u32[72,128]{1,0:T(1,128)}', space=vmem, size = 0x9000, scoped, tag = 'internal scratch']
  %s0 = inlined_call_operand.vmem [shape: f32[8,256], index: 0, kind: input, shape index: {}]
  %s1 = inlined_call_operand.vmem [shape: f32[256,128], index: 1, kind: input, shape index: {}]
  %s2 = inlined_call_operand.vmem [shape: f32[1,128], index: 2, kind: input, shape index: {}]
  %s3 = inlined_call_operand.hbm [shape: f32[8,128], index: 3, kind: output, shape index: {}]
  %s4 = sld [smem:[#allocation0]]
  $region22: #{patch_embed_forward.1} parent=0
    _
  %s6 = ssub.s32 1, %s4
  %s7 = scalar_select 0, %s6, %s4
  $region1: #{patch_embed_forward.1} parent=0
    #allocation2 [shape = 'u8[4096]{0}', space=vmem, size = 0x1000, scoped, tag = 'output window, operand 0, single buffered']
    #allocation3 [shape = 's32[1]{0}', space=sflag, size = 0x4, scoped, tag = 'scoped memory for patch_embed_forward.1']
    %8 = vsyncpa [#allocation3], 0
    // Predicated region
    $region2: #{patch_embed_forward.1} parent=1 // pred_check
      _
    $region3: #{patch_embed_forward.1} parent=1 // pred_check_branch
      %10 = sbr.rel (0) target = $region5
    $region4: #{patch_embed_forward.1} parent=1 // pred_region
      _
    $region5: #{patch_embed_forward.1} parent=1 // pred_fallthru
      _
    // Predicated region
    $region6: #{patch_embed_forward.1} parent=1 // pred_check
      _
    $region7: #{patch_embed_forward.1} parent=1 // pred_check_branch
      %12 = sbr.rel (0) target = $region9
    $region8: #{patch_embed_forward.1} parent=1 // pred_region
      _
    $region9: #{patch_embed_forward.1} parent=1 // pred_fallthru
      _
    // Predicated region
    $region10: #{patch_embed_forward.1} parent=1 // pred_check
      _
    $region11: #{patch_embed_forward.1} parent=1 // pred_check_branch
      %14 = sbr.rel (0) target = $region13
    $region12: #{patch_embed_forward.1} parent=1 // pred_region
      _
    $region13: #{patch_embed_forward.1} parent=1 // pred_fallthru
      _
    %v15 = vld [vmem:[%s0] sm:$0xff]
    %v16 = vld [vmem:[%s0 + $0x8] sm:$0xff]
    %v17 = vld [vmem:[%s1] sm:$0xff]
    %v18 = vld [vmem:[%s1 + $0x8] sm:$0xff]
    %v19 = vld [vmem:[%s1 + $0x10] sm:$0xff]
    %v20 = vld [vmem:[%s1 + $0x18] sm:$0xff]
    %v21 = vld [vmem:[%s1 + $0x20] sm:$0xff]
    %v22 = vld [vmem:[%s1 + $0x28] sm:$0xff]
    %v23 = vld [vmem:[%s1 + $0x30] sm:$0xff]
    %v24 = vld [vmem:[%s1 + $0x38] sm:$0xff]
    %v25 = vld [vmem:[%s1 + $0x40] sm:$0xff]
    %v26 = vld [vmem:[%s1 + $0x48] sm:$0xff]
    %v27 = vld [vmem:[%s1 + $0x50] sm:$0xff]
    %v28 = vld [vmem:[%s1 + $0x58] sm:$0xff]
    %v29 = vld [vmem:[%s1 + $0x60] sm:$0xff]
    %v30 = vld [vmem:[%s1 + $0x68] sm:$0xff]
    %v31 = vld [vmem:[%s1 + $0x70] sm:$0xff]
    %v32 = vld [vmem:[%s1 + $0x78] sm:$0xff]
    %v33 = vld [vmem:[%s1 + $0x80] sm:$0xff]
    %v34 = vld [vmem:[%s1 + $0x88] sm:$0xff]
    %v35 = vld [vmem:[%s1 + $0x90] sm:$0xff]
    %v36 = vld [vmem:[%s1 + $0x98] sm:$0xff]
    %v37 = vld [vmem:[%s1 + $0xa0] sm:$0xff]
    %v38 = vld [vmem:[%s1 + $0xa8] sm:$0xff]
    %v39 = vld [vmem:[%s1 + $0xb0] sm:$0xff]
    %v40 = vld [vmem:[%s1 + $0xb8] sm:$0xff]
    %v41 = vld [vmem:[%s1 + $0xc0] sm:$0xff]
    %v42 = vld [vmem:[%s1 + $0xc8] sm:$0xff]
    %v43 = vld [vmem:[%s1 + $0xd0] sm:$0xff]
    %v44 = vld [vmem:[%s1 + $0xd8] sm:$0xff]
    %v45 = vld [vmem:[%s1 + $0xe0] sm:$0xff]
    %v46 = vld [vmem:[%s1 + $0xe8] sm:$0xff]
    %v47 = vld [vmem:[%s1 + $0xf0] sm:$0xff]
    %v48 = vld [vmem:[%s1 + $0xf8] sm:$0xff]
    %v49 = vld [vmem:[%s2] sm:$0x1]
    %v51 = vperm.slane %v49, 0
    %53 = vmatpush.msra.mxu0 %v32
    %54 = vmatpush.msra.mxu0 %v31
    %55 = vmatpush.msra.mxu0 %v30
    %56 = vmatpush.msra.mxu0 %v29
    %57 = vmatpush.msra.mxu0 %v28
    %58 = vmatpush.msra.mxu0 %v27
    %59 = vmatpush.msra.mxu0 %v26
    %60 = vmatpush.msra.mxu0 %v25
    %61 = vmatpush.msra.mxu0 %v24
    %62 = vmatpush.msra.mxu0 %v23
    %63 = vmatpush.msra.mxu0 %v22
    %64 = vmatpush.msra.mxu0 %v21
    %65 = vmatpush.msra.mxu0 %v20
    %66 = vmatpush.msra.mxu0 %v19
    %67 = vmatpush.msra.mxu0 %v18
    %68 = vmatpush.msra.mxu0 %v17
    %69 = vmatmul.f32.gmra.mxu0 %v15
    %v70 = vpop.f32.mrf.mxu0
    %v71 = vadd.f32 %v51, %v70
    %72 = vdwg.mxu0
    %73 = vmatpush.msra.mxu0 %v48
    %74 = vmatpush.msra.mxu0 %v47
    %75 = vmatpush.msra.mxu0 %v46
    %76 = vmatpush.msra.mxu0 %v45
    %77 = vmatpush.msra.mxu0 %v44
    %78 = vmatpush.msra.mxu0 %v43
    %79 = vmatpush.msra.mxu0 %v42
    %80 = vmatpush.msra.mxu0 %v41
    %81 = vmatpush.msra.mxu0 %v40
    %82 = vmatpush.msra.mxu0 %v39
    %83 = vmatpush.msra.mxu0 %v38
    %84 = vmatpush.msra.mxu0 %v37
    %85 = vmatpush.msra.mxu0 %v36
    %86 = vmatpush.msra.mxu0 %v35
    %87 = vmatpush.msra.mxu0 %v34
    %88 = vmatpush.msra.mxu0 %v33
    %89 = vmatmul.f32.gmra.mxu0 %v16
    %v90 = vpop.f32.mrf.mxu0
    %v91 = vadd.f32 %v71, %v90
    %92 = vdwg.mxu0
    %93 = vst [vmem:[#allocation2] sm:$0xff] %v91
    // Predicated region
    $region14: #{patch_embed_forward.1} parent=1 // pred_check
      _
    $region15: #{patch_embed_forward.1} parent=1 // pred_check_branch
      %95 = sbr.rel (0) target = $region17
    $region16: #{patch_embed_forward.1} parent=1 // pred_region
      %97 = vsyncadd [#allocation3], 0
      %s99 = sshll.u32 [#allocation2], 4
      %s100 = int_to_ptr.vmem [resolvable:$true] %s99
      %s101 = sshll.u32 %s3, 4
      %s102 = int_to_ptr.hbm [resolvable:$true] %s101
      %104 = dma.vmem_to_hbm [thread:$0]  %s100, 128, %s102, [#allocation3]
    $region17: #{patch_embed_forward.1} parent=1 // pred_fallthru
      _
    // Predicated region
    $region18: #{patch_embed_forward.1} parent=1 // pred_check
      _
    $region19: #{patch_embed_forward.1} parent=1 // pred_check_branch
      %106 = sbr.rel (0) target = $region21
    $region20: #{patch_embed_forward.1} parent=1 // pred_region
      %108 = dma.done [#allocation3], 128
    $region21: #{patch_embed_forward.1} parent=1 // pred_fallthru
      _
    %109 = vsyncpa [#allocation3], 1

</llo_original>
